<compile_context>
chip_gen: v5e
topology: v5e:2x2
jax: 0.10.0
libtpu: 0.0.40
codegen_flags: <defaults>
</compile_context>

<pallas_src>
import jax
import jax.numpy as jnp
from jax.experimental import pallas as pl
from jax.experimental.pallas import tpu as pltpu

IN_DIM = 3 * 3            # 9
HID_DIM = 3 * 3 * 30      # 270
POL_DIM = 3 * 3           # 9
VAL_DIM = 1

HID_PAD = 384             # 270 padded to 3 * 128 lanes (zero pad, exact)
HEAD_PAD = 128            # fused policy|value head, lane-dense output width
TB_MAX = 1024             # max batch-tile rows per grid step


def _round_up(x, m):
    return (x + m - 1) // m * m


def _alphattt_kernel(x_ref, w1_ref, b1_ref, w2_ref, b2_ref, wh_ref, bh_ref,
                     out_ref):
    # x tile: [TB, 9]; bf16 operands for the MXU, f32 accumulation.
    x = x_ref[...].astype(jnp.bfloat16)

    # proj + ReLU  (bias/ReLU in f32 on the VPU)
    h1 = jnp.dot(x, w1_ref[...], preferred_element_type=jnp.float32) + b1_ref[...]
    h1 = jnp.maximum(h1, 0.0).astype(jnp.bfloat16)

    # hid + ReLU
    h2 = jnp.dot(h1, w2_ref[...], preferred_element_type=jnp.float32) + b2_ref[...]
    h2 = jnp.maximum(h2, 0.0).astype(jnp.bfloat16)

    # fused policy+value head -> one lane-dense [TB, 128] store
    out = jnp.dot(h2, wh_ref[...], preferred_element_type=jnp.float32) + bh_ref[...]
    out_ref[...] = out.astype(out_ref.dtype)


def init_params(key):
    """PyTorch nn.Linear-style init (U[-1/sqrt(fan_in), 1/sqrt(fan_in)]).

    Weights stored as [in, out] (already transposed for x @ W)."""
    def linear(key, fan_in, fan_out):
        kw, kb = jax.random.split(key)
        bound = 1.0 / jnp.sqrt(fan_in)
        w = jax.random.uniform(kw, (fan_in, fan_out), jnp.float32, -bound, bound)
        b = jax.random.uniform(kb, (1, fan_out), jnp.float32, -bound, bound)
        return w, b

    k1, k2, k3, k4 = jax.random.split(key, 4)
    w1, b1 = linear(k1, IN_DIM, HID_DIM)
    w2, b2 = linear(k2, HID_DIM, HID_DIM)
    wp, bp = linear(k3, HID_DIM, POL_DIM)
    wv, bv = linear(k4, HID_DIM, VAL_DIM)
    return (w1, b1, w2, b2, wp, bp, wv, bv)


def prepare_params(params):
    """Zero-pad hidden dim to 384, fuse policy+value heads into one 128-wide
    weight, and cast matmul operands to bf16 (biases stay f32)."""
    w1, b1, w2, b2, wp, bp, wv, bv = params

    w1p = jnp.zeros((IN_DIM, HID_PAD), jnp.float32).at[:, :HID_DIM].set(w1)
    b1p = jnp.zeros((1, HID_PAD), jnp.float32).at[:, :HID_DIM].set(b1.reshape(1, -1))
    w2p = jnp.zeros((HID_PAD, HID_PAD), jnp.float32).at[:HID_DIM, :HID_DIM].set(w2)
    b2p = jnp.zeros((1, HID_PAD), jnp.float32).at[:, :HID_DIM].set(b2.reshape(1, -1))

    whp = jnp.zeros((HID_PAD, HEAD_PAD), jnp.float32)
    whp = whp.at[:HID_DIM, :POL_DIM].set(wp)
    whp = whp.at[:HID_DIM, POL_DIM:POL_DIM + VAL_DIM].set(wv)
    bhp = jnp.zeros((1, HEAD_PAD), jnp.float32)
    bhp = bhp.at[:, :POL_DIM].set(bp.reshape(1, -1))
    bhp = bhp.at[:, POL_DIM:POL_DIM + VAL_DIM].set(bv.reshape(1, -1))

    return (w1p.astype(jnp.bfloat16), b1p,
            w2p.astype(jnp.bfloat16), b2p,
            whp.astype(jnp.bfloat16), bhp)


def alphattt_forward(state, params):
    """state: [B, 9] float32 -> (pi [B, 9], val [B, 1])"""
    w1p, b1p, w2p, b2p, whp, bhp = prepare_params(params)

    B = state.shape[0]
    TB = min(TB_MAX, _round_up(B, 8))        # batch tile (multiple of 8)
    B_pad = _round_up(B, TB)

    x = state.astype(jnp.float32)
    if B_pad != B:
        x = jnp.pad(x, ((0, B_pad - B), (0, 0)))

    const = lambda shape: pl.BlockSpec(shape, lambda i: (0, 0))  # VMEM-resident

    out = pl.pallas_call(
        _alphattt_kernel,
        out_shape=jax.ShapeDtypeStruct((B_pad, HEAD_PAD), jnp.float32),
        grid=(B_pad // TB,),
        in_specs=[pl.BlockSpec((TB, IN_DIM), lambda i: (i, 0)),   # x tile
                  const(w1p.shape), const(b1p.shape),
                  const(w2p.shape), const(b2p.shape),
                  const(whp.shape), const(bhp.shape)],
        out_specs=pl.BlockSpec((TB, HEAD_PAD), lambda i: (i, 0)),
        compiler_params=pltpu.CompilerParams(
            dimension_semantics=("parallel",),        # v7x: 2 TCs share the batch
            vmem_limit_bytes=32 * 1024 * 1024),
    )(x, w1p, b1p, w2p, b2p, whp, bhp)

    out = out[:B]
    pi = out[:, :POL_DIM]
    val = out[:, POL_DIM:POL_DIM + VAL_DIM]
    return pi, val


def alphattt_ref(state, params):
    """Plain-JAX f32 reference (matches the PyTorch module semantics)."""
    w1, b1, w2, b2, wp, bp, wv, bv = params
    h1 = jnp.maximum(state @ w1 + b1, 0.0)
    h2 = jnp.maximum(h1 @ w2 + b2, 0.0)
    return h2 @ wp + bp, h2 @ wv + bv


def alphattt_ref_bf16(state, params):
    """Reference mirroring the kernel's bf16-operand / f32-accumulate policy."""
    w1, b1, w2, b2, wp, bp, wv, bv = params
    dot = lambda a, b: jnp.dot(a.astype(jnp.bfloat16), b.astype(jnp.bfloat16),
                               preferred_element_type=jnp.float32)
    h1 = jnp.maximum(dot(state, w1) + b1, 0.0)
    h2 = jnp.maximum(dot(h1, w2) + b2, 0.0)
    return dot(h2, wp) + bp, dot(h2, wv) + bv


# TODO(synk): the interactive `run()` game loop (human I/O + multinomial
# sampling against the TicTacToe env) is host-side logic, not a kernel.

if __name__ == "__main__":
    key = jax.random.PRNGKey(0)
    k_params, k_state = jax.random.split(key)

    params = init_params(k_params)

    # Example batch of board states: values in {-1, 0, 1} like game.state()*player
    B = 2
    state = jax.random.randint(k_state, (B, IN_DIM), -1, 2).astype(jnp.float32)

    pi, val = alphattt_forward(state, params)
    jax.block_until_ready((pi, val))

    assert pi.shape == (B, POL_DIM) and val.shape == (B, VAL_DIM)

    # Tight check against a reference with the same bf16/f32 precision policy.
    pi_bf, val_bf = alphattt_ref_bf16(state, params)
    assert jnp.allclose(pi, pi_bf, atol=2e-3, rtol=2e-3)
    assert jnp.allclose(val, val_bf, atol=2e-3, rtol=2e-3)

    # Loose check against the full-f32 module semantics.
    pi_f32, val_f32 = alphattt_ref(state, params)
    assert jnp.allclose(pi, pi_f32, atol=1e-1, rtol=1e-1)
    assert jnp.allclose(val, val_f32, atol=1e-1, rtol=1e-1)

    print("KERNEL_OK")
</pallas_src>

<mosaic_0001>
module attributes {stable_mosaic.version = 11 : i64} {
  func.func @_alphattt_kernel(%arg0: i32, %arg1: memref<8x9xf32, #tpu.memory_space<vmem>>, %arg2: memref<9x384xbf16, #tpu.memory_space<vmem>>, %arg3: memref<1x384xf32, #tpu.memory_space<vmem>>, %arg4: memref<384x384xbf16, #tpu.memory_space<vmem>>, %arg5: memref<1x384xf32, #tpu.memory_space<vmem>>, %arg6: memref<384x128xbf16, #tpu.memory_space<vmem>>, %arg7: memref<1x128xf32, #tpu.memory_space<vmem>>, %arg8: memref<8x128xf32, #tpu.memory_space<vmem>>) attributes {dimension_semantics = [#tpu.dimension_semantics<parallel>], iteration_bounds = array<i64: 1>, scalar_prefetch = 0 : i64, scratch_operands = 0 : i64, tpu.core_type = #tpu.core_type<tc>, window_params = [{transform_indices = @transform_0, window_bounds = array<i64: 8, 9>}, {pipeline_mode = #tpu.pipeline_mode<synchronous>, transform_indices = @transform_1, window_bounds = array<i64: 9, 384>}, {pipeline_mode = #tpu.pipeline_mode<synchronous>, transform_indices = @transform_2, window_bounds = array<i64: 1, 384>}, {pipeline_mode = #tpu.pipeline_mode<synchronous>, transform_indices = @transform_3, window_bounds = array<i64: 384, 384>}, {pipeline_mode = #tpu.pipeline_mode<synchronous>, transform_indices = @transform_4, window_bounds = array<i64: 1, 384>}, {pipeline_mode = #tpu.pipeline_mode<synchronous>, transform_indices = @transform_5, window_bounds = array<i64: 384, 128>}, {pipeline_mode = #tpu.pipeline_mode<synchronous>, transform_indices = @transform_6, window_bounds = array<i64: 1, 128>}, {transform_indices = @transform_7, window_bounds = array<i64: 8, 128>}]} {
    %c0 = arith.constant 0 : index
    %c0_0 = arith.constant 0 : index
    %0 = vector.load %arg1[%c0, %c0_0] : memref<8x9xf32, #tpu.memory_space<vmem>>, vector<8x9xf32>
    %1 = arith.truncf %0 : vector<8x9xf32> to vector<8x9xbf16>
    %c0_1 = arith.constant 0 : index
    %c0_2 = arith.constant 0 : index
    %2 = vector.load %arg2[%c0_1, %c0_2] : memref<9x384xbf16, #tpu.memory_space<vmem>>, vector<9x384xbf16>
    %cst = arith.constant dense<0.000000e+00> : vector<8x384xf32>
    %3 = tpu.matmul %1, %2, %cst {dimension_numbers = #tpu.dot_dimension_numbers<[1], [0], [0], [1], [0, 0, 1, 1], [], []>} : vector<8x9xbf16>, vector<9x384xbf16>, vector<8x384xf32> -> vector<8x384xf32>
    %c0_3 = arith.constant 0 : index
    %c0_4 = arith.constant 0 : index
    %4 = vector.load %arg3[%c0_3, %c0_4] : memref<1x384xf32, #tpu.memory_space<vmem>>, vector<1x384xf32>
    %5 = vector.broadcast %4 : vector<1x384xf32> to vector<8x384xf32>
    %6 = arith.addf %3, %5 : vector<8x384xf32>
    %cst_5 = arith.constant 0.000000e+00 : f32
    %7 = vector.broadcast %cst_5 : f32 to vector<8x384xf32>
    %8 = arith.maximumf %6, %7 : vector<8x384xf32>
    %9 = arith.truncf %8 : vector<8x384xf32> to vector<8x384xbf16>
    %c0_6 = arith.constant 0 : index
    %c0_7 = arith.constant 0 : index
    %10 = vector.load %arg4[%c0_6, %c0_7] : memref<384x384xbf16, #tpu.memory_space<vmem>>, vector<384x384xbf16>
    %cst_8 = arith.constant dense<0.000000e+00> : vector<8x384xf32>
    %11 = tpu.matmul %9, %10, %cst_8 {dimension_numbers = #tpu.dot_dimension_numbers<[1], [0], [0], [1], [0, 0, 1, 1], [], []>} : vector<8x384xbf16>, vector<384x384xbf16>, vector<8x384xf32> -> vector<8x384xf32>
    %c0_9 = arith.constant 0 : index
    %c0_10 = arith.constant 0 : index
    %12 = vector.load %arg5[%c0_9, %c0_10] : memref<1x384xf32, #tpu.memory_space<vmem>>, vector<1x384xf32>
    %13 = vector.broadcast %12 : vector<1x384xf32> to vector<8x384xf32>
    %14 = arith.addf %11, %13 : vector<8x384xf32>
    %cst_11 = arith.constant 0.000000e+00 : f32
    %15 = vector.broadcast %cst_11 : f32 to vector<8x384xf32>
    %16 = arith.maximumf %14, %15 : vector<8x384xf32>
    %17 = arith.truncf %16 : vector<8x384xf32> to vector<8x384xbf16>
    %c0_12 = arith.constant 0 : index
    %c0_13 = arith.constant 0 : index
    %18 = vector.load %arg6[%c0_12, %c0_13] : memref<384x128xbf16, #tpu.memory_space<vmem>>, vector<384x128xbf16>
    %cst_14 = arith.constant dense<0.000000e+00> : vector<8x128xf32>
    %19 = tpu.matmul %17, %18, %cst_14 {dimension_numbers = #tpu.dot_dimension_numbers<[1], [0], [0], [1], [0, 0, 1, 1], [], []>} : vector<8x384xbf16>, vector<384x128xbf16>, vector<8x128xf32> -> vector<8x128xf32>
    %c0_15 = arith.constant 0 : index
    %c0_16 = arith.constant 0 : index
    %20 = vector.load %arg7[%c0_15, %c0_16] : memref<1x128xf32, #tpu.memory_space<vmem>>, vector<1x128xf32>
    %21 = vector.broadcast %20 : vector<1x128xf32> to vector<8x128xf32>
    %22 = arith.addf %19, %21 : vector<8x128xf32>
    %c0_17 = arith.constant 0 : index
    %c0_18 = arith.constant 0 : index
    %23 = vector.load %arg8[%c0_17, %c0_18] : memref<8x128xf32, #tpu.memory_space<vmem>>, vector<8x128xf32>
    tpu.vector_store %arg8[%c0_17, %c0_18], %22 {strides = array<i32>} : memref<8x128xf32, #tpu.memory_space<vmem>>, vector<8x128xf32>,
    return
  }
  func.func @transform_0(%arg0: i32) -> (i32, i32) {
    %c0_i32 = arith.constant 0 : i32
    %c0_i32_0 = arith.constant 0 : i32
    return %arg0, %c0_i32 : i32, i32
  }
  func.func @transform_1(%arg0: i32) -> (i32, i32) {
    %c0_i32 = arith.constant 0 : i32
    %c0_i32_0 = arith.constant 0 : i32
    %c0_i32_1 = arith.constant 0 : i32
    return %c0_i32, %c0_i32_0 : i32, i32
  }
  func.func @transform_2(%arg0: i32) -> (i32, i32) {
    %c0_i32 = arith.constant 0 : i32
    %c0_i32_0 = arith.constant 0 : i32
    %c0_i32_1 = arith.constant 0 : i32
    return %c0_i32, %c0_i32_0 : i32, i32
  }
  func.func @transform_3(%arg0: i32) -> (i32, i32) {
    %c0_i32 = arith.constant 0 : i32
    %c0_i32_0 = arith.constant 0 : i32
    %c0_i32_1 = arith.constant 0 : i32
    return %c0_i32, %c0_i32_0 : i32, i32
  }
  func.func @transform_4(%arg0: i32) -> (i32, i32) {
    %c0_i32 = arith.constant 0 : i32
    %c0_i32_0 = arith.constant 0 : i32
    %c0_i32_1 = arith.constant 0 : i32
    return %c0_i32, %c0_i32_0 : i32, i32
  }
  func.func @transform_5(%arg0: i32) -> (i32, i32) {
    %c0_i32 = arith.constant 0 : i32
    %c0_i32_0 = arith.constant 0 : i32
    %c0_i32_1 = arith.constant 0 : i32
    return %c0_i32, %c0_i32_0 : i32, i32
  }
  func.func @transform_6(%arg0: i32) -> (i32, i32) {
    %c0_i32 = arith.constant 0 : i32
    %c0_i32_0 = arith.constant 0 : i32
    %c0_i32_1 = arith.constant 0 : i32
    return %c0_i32, %c0_i32_0 : i32, i32
  }
  func.func @transform_7(%arg0: i32) -> (i32, i32) {
    %c0_i32 = arith.constant 0 : i32
    %c0_i32_0 = arith.constant 0 : i32
    return %arg0, %c0_i32 : i32, i32
  }
}

</mosaic_0001>

<llo_original>
// kernel: tpu_custom_call.1
$region0: #{tpu_custom_call.1}
  #allocation0 [shape = 'u32[]', space=smem, size = 0x4, offset = 0x4, fixed_abs, tag = 'smem constant byte address 0x4 - core index']
  #allocation1 [shape = 'u32[72,128]{1,0:T(1,128)}', space=vmem, size = 0x9000, scoped, tag = 'internal scratch']
  %s0 = inlined_call_operand.hbm [shape: f32[8,9], index: 0, kind: input, shape index: {}]
  %s1 = inlined_call_operand.hbm [shape: bf16[9,384], index: 1, kind: input, shape index: {}]
  %s2 = inlined_call_operand.hbm [shape: f32[1,384], index: 2, kind: input, shape index: {}]
  %s3 = inlined_call_operand.hbm [shape: bf16[384,384], index: 3, kind: input, shape index: {}]
  %s4 = inlined_call_operand.vmem [shape: f32[1,384], index: 4, kind: input, shape index: {}]
  %s5 = inlined_call_operand.hbm [shape: bf16[384,128], index: 5, kind: input, shape index: {}]
  %s6 = inlined_call_operand.vmem [shape: f32[1,128], index: 6, kind: input, shape index: {}]
  %s7 = inlined_call_operand.hbm [shape: f32[8,128], index: 7, kind: output, shape index: {}]
  %s8 = sld [smem:[#allocation0]]
  $region58: #{tpu_custom_call.1} parent=0
    _
  %s10 = ssub.s32 1, %s8
  %s11 = scalar_select 0, %s10, %s8
  $region1: #{tpu_custom_call.1} parent=0
    #allocation2 [shape = 'u8[4096]{0}', space=vmem, size = 0x1000, scoped, tag = 'input window, operand 0, single buffered']
    #allocation3 [shape = 's32[1]{0}', space=sflag, size = 0x4, scoped, tag = 'scoped memory for tpu_custom_call.1']
    #allocation4 [shape = 's32[1]{0}', space=sflag, size = 0x4, scoped, tag = 'scoped memory for tpu_custom_call.1']
    #allocation5 [shape = 'u8[12288]{0}', space=vmem, size = 0x3000, scoped, tag = 'input window, operand 1, single buffered']
    #allocation6 [shape = 's32[1]{0}', space=sflag, size = 0x4, scoped, tag = 'scoped memory for tpu_custom_call.1']
    #allocation7 [shape = 'u8[1536]{0}', space=vmem, size = 0x800, scoped, tag = 'input window, operand 2, single buffered']
    #allocation8 [shape = 'u8[294912]{0}', space=vmem, size = 0x48000, scoped, tag = 'input window, operand 3, single buffered']
    #allocation9 [shape = 's32[1]{0}', space=sflag, size = 0x4, scoped, tag = 'scoped memory for tpu_custom_call.1']
    #allocation10 [shape = 'u8[98304]{0}', space=vmem, size = 0x18000, scoped, tag = 'input window, operand 5, single buffered']
    #allocation11 [shape = 'u8[4096]{0}', space=vmem, size = 0x1000, scoped, tag = 'output window, operand 0, single buffered']
    %12 = vsyncpa [#allocation3], 0
    %13 = vsyncpa [#allocation6], 0
    %14 = vsyncpa [#allocation9], 0
    %15 = vsyncpa [#allocation4], 0
    // Predicated region
    $region2: #{tpu_custom_call.1} parent=1 // pred_check
      _
    $region3: #{tpu_custom_call.1} parent=1 // pred_check_branch
      %17 = sbr.rel (0) target = $region5
    $region4: #{tpu_custom_call.1} parent=1 // pred_region
      %19 = vsyncadd [#allocation3], 0
      %s21 = sshll.u32 %s0, 4
      %s22 = int_to_ptr.hbm [resolvable:$true] %s21
      %s23 = sshll.u32 [#allocation2], 4
      %s24 = int_to_ptr.vmem [resolvable:$true] %s23
      %26 = dma.hbm_to_vmem [thread:$0]  %s22, 128, %s24, [#allocation3]
    $region5: #{tpu_custom_call.1} parent=1 // pred_fallthru
      _
    // Predicated region
    $region6: #{tpu_custom_call.1} parent=1 // pred_check
      _
    $region7: #{tpu_custom_call.1} parent=1 // pred_check_branch
      %28 = sbr.rel (0) target = $region9
    $region8: #{tpu_custom_call.1} parent=1 // pred_region
      %30 = vsyncadd [#allocation6], 0
      %s31 = sshll.u32 %s1, 4
      %s32 = int_to_ptr.hbm [resolvable:$true] %s31
      %s33 = sshll.u32 [#allocation5], 4
      %s34 = int_to_ptr.vmem [resolvable:$true] %s33
      %39 = dma.hbm_to_vmem [thread:$0]  %s32, 384, %s34, [#allocation6], 192, 192, 12
    $region9: #{tpu_custom_call.1} parent=1 // pred_fallthru
      _
    // Predicated region
    $region10: #{tpu_custom_call.1} parent=1 // pred_check
      _
    $region11: #{tpu_custom_call.1} parent=1 // pred_check_branch
      %41 = sbr.rel (0) target = $region13
    $region12: #{tpu_custom_call.1} parent=1 // pred_region
      %43 = vsyncadd [#allocation6], 0
      %s45 = sshll.u32 %s2, 4
      %s46 = int_to_ptr.hbm [resolvable:$true] %s45
      %s47 = sshll.u32 [#allocation7], 4
      %s48 = int_to_ptr.vmem [resolvable:$true] %s47
      %50 = dma.hbm_to_vmem [thread:$0]  %s46, 48, %s48, [#allocation6]
    $region13: #{tpu_custom_call.1} parent=1 // pred_fallthru
      _
    // Predicated region
    $region14: #{tpu_custom_call.1} parent=1 // pred_check
      _
    $region15: #{tpu_custom_call.1} parent=1 // pred_check_branch
      %52 = sbr.rel (0) target = $region17
    $region16: #{tpu_custom_call.1} parent=1 // pred_region
      %54 = vsyncadd [#allocation9], 0
      %s55 = sshll.u32 %s3, 4
      %s56 = int_to_ptr.hbm [resolvable:$true] %s55
      %s57 = sshll.u32 [#allocation8], 4
      %s58 = int_to_ptr.vmem [resolvable:$true] %s57
      %63 = dma.hbm_to_vmem [thread:$0]  %s56, 9216, %s58, [#allocation9], 192, 192, 12
    $region17: #{tpu_custom_call.1} parent=1 // pred_fallthru
      _
    // Predicated region
    $region18: #{tpu_custom_call.1} parent=1 // pred_check
      _
    $region19: #{tpu_custom_call.1} parent=1 // pred_check_branch
      %65 = sbr.rel (0) target = $region21
    $region20: #{tpu_custom_call.1} parent=1 // pred_region
      _
    $region21: #{tpu_custom_call.1} parent=1 // pred_fallthru
      _
    // Predicated region
    $region22: #{tpu_custom_call.1} parent=1 // pred_check
      _
    $region23: #{tpu_custom_call.1} parent=1 // pred_check_branch
      %67 = sbr.rel (0) target = $region25
    $region24: #{tpu_custom_call.1} parent=1 // pred_region
      %69 = vsyncadd [#allocation9], 0
      %s70 = sshll.u32 %s5, 4
      %s71 = int_to_ptr.hbm [resolvable:$true] %s70
      %s72 = sshll.u32 [#allocation10], 4
      %s73 = int_to_ptr.vmem [resolvable:$true] %s72
      %78 = dma.hbm_to_vmem [thread:$0]  %s71, 3072, %s73, [#allocation9], 64, 64, 4
    $region25: #{tpu_custom_call.1} parent=1 // pred_fallthru
      _
    // Predicated region
    $region26: #{tpu_custom_call.1} parent=1 // pred_check
      _
    $region27: #{tpu_custom_call.1} parent=1 // pred_check_branch
      %80 = sbr.rel (0) target = $region29
    $region28: #{tpu_custom_call.1} parent=1 // pred_region
      _
    $region29: #{tpu_custom_call.1} parent=1 // pred_fallthru
      _
    // Predicated region
    $region30: #{tpu_custom_call.1} parent=1 // pred_check
      _
    $region31: #{tpu_custom_call.1} parent=1 // pred_check_branch
      %82 = sbr.rel (0) target = $region33
    $region32: #{tpu_custom_call.1} parent=1 // pred_region
      %84 = dma.done [#allocation3], 128
    $region33: #{tpu_custom_call.1} parent=1 // pred_fallthru
      _
    // Predicated region
    $region34: #{tpu_custom_call.1} parent=1 // pred_check
      _
    $region35: #{tpu_custom_call.1} parent=1 // pred_check_branch
      %86 = sbr.rel (0) target = $region37
    $region36: #{tpu_custom_call.1} parent=1 // pred_region
      %88 = dma.done [#allocation6], 384
    $region37: #{tpu_custom_call.1} parent=1 // pred_fallthru
      _
    // Predicated region
    $region38: #{tpu_custom_call.1} parent=1 // pred_check
      _
    $region39: #{tpu_custom_call.1} parent=1 // pred_check_branch
      %90 = sbr.rel (0) target = $region41
    $region40: #{tpu_custom_call.1} parent=1 // pred_region
      %92 = dma.done [#allocation6], 48
    $region41: #{tpu_custom_call.1} parent=1 // pred_fallthru
      _
    // Predicated region
    $region42: #{tpu_custom_call.1} parent=1 // pred_check
      _
    $region43: #{tpu_custom_call.1} parent=1 // pred_check_branch
      %94 = sbr.rel (0) target = $region45
    $region44: #{tpu_custom_call.1} parent=1 // pred_region
      %96 = dma.done [#allocation9], 9216
    $region45: #{tpu_custom_call.1} parent=1 // pred_fallthru
      _
    // Predicated region
    $region46: #{tpu_custom_call.1} parent=1 // pred_check
      _
    $region47: #{tpu_custom_call.1} parent=1 // pred_check_branch
      %98 = sbr.rel (0) target = $region49
    $region48: #{tpu_custom_call.1} parent=1 // pred_region
      %100 = dma.done [#allocation9], 3072
    $region49: #{tpu_custom_call.1} parent=1 // pred_fallthru
      _
    %v102 = vld [vmem:[#allocation2] sm:$0xff]
    %v103 = vpack.c.bf16 %v102, %v102
    %v104 = vld [vmem:[#allocation5] sm:$0xff]
    %v105 = vld [vmem:[#allocation5 + $0x8] sm:$0xf]
    %v106 = vld [vmem:[#allocation5 + $0xc] sm:$0x11]
    %v107 = vld [vmem:[#allocation5 + $0x14] sm:$0x1]
    %v108 = vld [vmem:[#allocation7] sm:$0x7]
    %v110 = vperm.slane %v108, 0
    %v111 = vperm.slane %v108, 1
    %v112 = vperm.slane %v108, 2
    %v120 = vunpack.c.l.b16 %v104
    %v121 = vunpack.c.h.b16 %v104
    %v122 = vunpack.c.l.b16 %v105
    %v123 = vunpack.c.l.b16 %v106
    %v124 = vunpack.c.h.b16 %v106
    %v125 = vunpack.c.l.b16 %v107
    %v126 = vpack.c.b16 %v123, %v120
    %v127 = vpack.c.b16 %v124, %v121
    %v128 = vpack.c.b16 %v125, %v122
    %vm129 = vcmask 72704
    %v131 = vsel %vm129, %v103, 0
    %vm133 = vcmask 1043456
    %vm134 = vcmask 1044480
    %v135 = vsel %vm133, 4294967295, 65535
    %v136 = vsel %vm134, %v135, 0
    %v138 = vand.u32 %v126, %v136
    %v141 = vand.u32 %v127, %v136
    %v144 = vand.u32 %v128, %v136
    %146 = vmatpush.bf16.msra.mxu0 0
    %147 = vmatpush.bf16.msra.mxu0 0
    %148 = vmatpush.bf16.msra.mxu0 0
    %149 = vmatpush.bf16.msra.mxu0 0
    %150 = vmatpush.bf16.msra.mxu0 0
    %151 = vmatpush.bf16.msra.mxu0 0
    %152 = vmatpush.bf16.msra.mxu0 0
    %153 = vmatpush.bf16.msra.mxu0 %v138
    %154 = vmatmul.bf16.gmra.mxu0 %v131
    %v155 = vpop.f32.mrf.mxu0
    %v156 = vadd.f32 %v110, %v155
    %v157 = vpop.f32.mrf.mxu0
    %158 = vdwg.mxu0
    %159 = vmatpush.bf16.msra.mxu0 0
    %160 = vmatpush.bf16.msra.mxu0 0
    %161 = vmatpush.bf16.msra.mxu0 0
    %162 = vmatpush.bf16.msra.mxu0 0
    %163 = vmatpush.bf16.msra.mxu0 0
    %164 = vmatpush.bf16.msra.mxu0 0
    %165 = vmatpush.bf16.msra.mxu0 0
    %166 = vmatpush.bf16.msra.mxu0 %v141
    %167 = vmatmul.bf16.gmra.mxu0 %v131
    %v168 = vpop.f32.mrf.mxu0
    %v169 = vadd.f32 %v111, %v168
    %v170 = vpop.f32.mrf.mxu0
    %171 = vdwg.mxu0
    %172 = vmatpush.bf16.msra.mxu0 0
    %173 = vmatpush.bf16.msra.mxu0 0
    %174 = vmatpush.bf16.msra.mxu0 0
    %175 = vmatpush.bf16.msra.mxu0 0
    %176 = vmatpush.bf16.msra.mxu0 0
    %177 = vmatpush.bf16.msra.mxu0 0
    %178 = vmatpush.bf16.msra.mxu0 0
    %179 = vmatpush.bf16.msra.mxu0 %v144
    %180 = vmatmul.bf16.gmra.mxu0 %v131
    %v181 = vpop.f32.mrf.mxu0
    %v182 = vadd.f32 %v112, %v181
    %v183 = vpop.f32.mrf.mxu0
    %184 = vdwg.mxu0
    %v185 = vmax.f32 %v156, 0.0
    %v186 = vmax.f32 %v169, 0.0
    %v187 = vmax.f32 %v182, 0.0
    %v188 = vpack.c.bf16 %v185, %v185
    %v189 = vpack.c.bf16 %v186, %v186
    %v190 = vpack.c.bf16 %v187, %v187
    %v191 = vld [vmem:[#allocation8] sm:$0xff]
    %v192 = vld [vmem:[#allocation8 + $0x8] sm:$0xf]
    %v193 = vld [vmem:[#allocation8 + $0xc] sm:$0xff]
    %v194 = vld [vmem:[#allocation8 + $0x14] sm:$0xf]
    %v195 = vld [vmem:[#allocation8 + $0x18] sm:$0xff]
    %v196 = vld [vmem:[#allocation8 + $0x20] sm:$0xf]
    %v197 = vld [vmem:[#allocation8 + $0x24] sm:$0xff]
    %v198 = vld [vmem:[#allocation8 + $0x2c] sm:$0xf]
    %v199 = vld [vmem:[#allocation8 + $0x30] sm:$0xff]
    %v200 = vld [vmem:[#allocation8 + $0x38] sm:$0xf]
    %v201 = vld [vmem:[#allocation8 + $0x3c] sm:$0xff]
    %v202 = vld [vmem:[#allocation8 + $0x44] sm:$0xf]
    %v203 = vld [vmem:[#allocation8 + $0x48] sm:$0xff]
    %v204 = vld [vmem:[#allocation8 + $0x50] sm:$0xf]
    %v205 = vld [vmem:[#allocation8 + $0x54] sm:$0xff]
    %v206 = vld [vmem:[#allocation8 + $0x5c] sm:$0xf]
    %v207 = vld [vmem:[#allocation8 + $0x60] sm:$0xff]
    %v208 = vld [vmem:[#allocation8 + $0x68] sm:$0xf]
    %v209 = vld [vmem:[#allocation8 + $0x6c] sm:$0xff]
    %v210 = vld [vmem:[#allocation8 + $0x74] sm:$0xf]
    %v211 = vld [vmem:[#allocation8 + $0x78] sm:$0xff]
    %v212 = vld [vmem:[#allocation8 + $0x80] sm:$0xf]
    %v213 = vld [vmem:[#allocation8 + $0x84] sm:$0xff]
    %v214 = vld [vmem:[#allocation8 + $0x8c] sm:$0xf]
    %v215 = vld [vmem:[#allocation8 + $0x90] sm:$0xff]
    %v216 = vld [vmem:[#allocation8 + $0x98] sm:$0xf]
    %v217 = vld [vmem:[#allocation8 + $0x9c] sm:$0xff]
    %v218 = vld [vmem:[#allocation8 + $0xa4] sm:$0xf]
    %v219 = vld [vmem:[#allocation8 + $0xa8] sm:$0xff]
    %v220 = vld [vmem:[#allocation8 + $0xb0] sm:$0xf]
    %v221 = vld [vmem:[#allocation8 + $0xb4] sm:$0xff]
    %v222 = vld [vmem:[#allocation8 + $0xbc] sm:$0xf]
    %v223 = vld [vmem:[#allocation8 + $0xc0] sm:$0xff]
    %v224 = vld [vmem:[#allocation8 + $0xc8] sm:$0xf]
    %v225 = vld [vmem:[#allocation8 + $0xcc] sm:$0xff]
    %v226 = vld [vmem:[#allocation8 + $0xd4] sm:$0xf]
    %v227 = vld [vmem:[#allocation8 + $0xd8] sm:$0xff]
    %v228 = vld [vmem:[#allocation8 + $0xe0] sm:$0xf]
    %v229 = vld [vmem:[#allocation8 + $0xe4] sm:$0xff]
    %v230 = vld [vmem:[#allocation8 + $0xec] sm:$0xf]
    %v231 = vld [vmem:[#allocation8 + $0xf0] sm:$0xff]
    %v232 = vld [vmem:[#allocation8 + $0xf8] sm:$0xf]
    %v233 = vld [vmem:[#allocation8 + $0xfc] sm:$0xff]
    %v234 = vld [vmem:[#allocation8 + $0x104] sm:$0xf]
    %v235 = vld [vmem:[#allocation8 + $0x108] sm:$0xff]
    %v236 = vld [vmem:[#allocation8 + $0x110] sm:$0xf]
    %v237 = vld [vmem:[#allocation8 + $0x114] sm:$0xff]
    %v238 = vld [vmem:[#allocation8 + $0x11c] sm:$0xf]
    %v239 = vld [vmem:[#allocation8 + $0x120] sm:$0xff]
    %v240 = vld [vmem:[#allocation8 + $0x128] sm:$0xf]
    %v241 = vld [vmem:[#allocation8 + $0x12c] sm:$0xff]
    %v242 = vld [vmem:[#allocation8 + $0x134] sm:$0xf]
    %v243 = vld [vmem:[#allocation8 + $0x138] sm:$0xff]
    %v244 = vld [vmem:[#allocation8 + $0x140] sm:$0xf]
    %v245 = vld [vmem:[#allocation8 + $0x144] sm:$0xff]
    %v246 = vld [vmem:[#allocation8 + $0x14c] sm:$0xf]
    %v247 = vld [vmem:[#allocation8 + $0x150] sm:$0xff]
    %v248 = vld [vmem:[#allocation8 + $0x158] sm:$0xf]
    %v249 = vld [vmem:[#allocation8 + $0x15c] sm:$0xff]
    %v250 = vld [vmem:[#allocation8 + $0x164] sm:$0xf]
    %v251 = vld [vmem:[#allocation8 + $0x168] sm:$0xff]
    %v252 = vld [vmem:[#allocation8 + $0x170] sm:$0xf]
    %v253 = vld [vmem:[#allocation8 + $0x174] sm:$0xff]
    %v254 = vld [vmem:[#allocation8 + $0x17c] sm:$0xf]
    %v255 = vld [vmem:[#allocation8 + $0x180] sm:$0xff]
    %v256 = vld [vmem:[#allocation8 + $0x188] sm:$0xf]
    %v257 = vld [vmem:[#allocation8 + $0x18c] sm:$0xff]
    %v258 = vld [vmem:[#allocation8 + $0x194] sm:$0xf]
    %v259 = vld [vmem:[#allocation8 + $0x198] sm:$0xff]
    %v260 = vld [vmem:[#allocation8 + $0x1a0] sm:$0xf]
    %v261 = vld [vmem:[#allocation8 + $0x1a4] sm:$0xff]
    %v262 = vld [vmem:[#allocation8 + $0x1ac] sm:$0xf]
    %v263 = vld [vmem:[#allocation8 + $0x1b0] sm:$0xff]
    %v264 = vld [vmem:[#allocation8 + $0x1b8] sm:$0xf]
    %v265 = vld [vmem:[#allocation8 + $0x1bc] sm:$0xff]
    %v266 = vld [vmem:[#allocation8 + $0x1c4] sm:$0xf]
    %v267 = vld [vmem:[#allocation8 + $0x1c8] sm:$0xff]
    %v268 = vld [vmem:[#allocation8 + $0x1d0] sm:$0xf]
    %v269 = vld [vmem:[#allocation8 + $0x1d4] sm:$0xff]
    %v270 = vld [vmem:[#allocation8 + $0x1dc] sm:$0xf]
    %v271 = vld [vmem:[#allocation8 + $0x1e0] sm:$0xff]
    %v272 = vld [vmem:[#allocation8 + $0x1e8] sm:$0xf]
    %v273 = vld [vmem:[#allocation8 + $0x1ec] sm:$0xff]
    %v274 = vld [vmem:[#allocation8 + $0x1f4] sm:$0xf]
    %v275 = vld [vmem:[#allocation8 + $0x1f8] sm:$0xff]
    %v276 = vld [vmem:[#allocation8 + $0x200] sm:$0xf]
    %v277 = vld [vmem:[#allocation8 + $0x204] sm:$0xff]
    %v278 = vld [vmem:[#allocation8 + $0x20c] sm:$0xf]
    %v279 = vld [vmem:[#allocation8 + $0x210] sm:$0xff]
    %v280 = vld [vmem:[#allocation8 + $0x218] sm:$0xf]
    %v281 = vld [vmem:[#allocation8 + $0x21c] sm:$0xff]
    %v282 = vld [vmem:[#allocation8 + $0x224] sm:$0xf]
    %v283 = vld [vmem:[#allocation8 + $0x228] sm:$0xff]
    %v284 = vld [vmem:[#allocation8 + $0x230] sm:$0xf]
    %v285 = vld [vmem:[#allocation8 + $0x234] sm:$0xff]
    %v286 = vld [vmem:[#allocation8 + $0x23c] sm:$0xf]
    %v287 = vld [vmem:[%s4] sm:$0x7]
    %v289 = vperm.slane %v287, 0
    %v290 = vperm.slane %v287, 1
    %v291 = vperm.slane %v287, 2
    %v391 = vunpack.c.l.b16 %v191
    %v392 = vunpack.c.h.b16 %v191
    %v393 = vunpack.c.l.b16 %v192
    %v394 = vunpack.c.l.b16 %v193
    %v395 = vunpack.c.h.b16 %v193
    %v396 = vunpack.c.l.b16 %v194
    %v397 = vunpack.c.l.b16 %v195
    %v398 = vunpack.c.h.b16 %v195
    %v399 = vunpack.c.l.b16 %v196
    %v400 = vunpack.c.l.b16 %v197
    %v401 = vunpack.c.h.b16 %v197
    %v402 = vunpack.c.l.b16 %v198
    %v403 = vunpack.c.l.b16 %v199
    %v404 = vunpack.c.h.b16 %v199
    %v405 = vunpack.c.l.b16 %v200
    %v406 = vunpack.c.l.b16 %v201
    %v407 = vunpack.c.h.b16 %v201
    %v408 = vunpack.c.l.b16 %v202
    %v409 = vunpack.c.l.b16 %v203
    %v410 = vunpack.c.h.b16 %v203
    %v411 = vunpack.c.l.b16 %v204
    %v412 = vunpack.c.l.b16 %v205
    %v413 = vunpack.c.h.b16 %v205
    %v414 = vunpack.c.l.b16 %v206
    %v415 = vunpack.c.l.b16 %v207
    %v416 = vunpack.c.h.b16 %v207
    %v417 = vunpack.c.l.b16 %v208
    %v418 = vunpack.c.l.b16 %v209
    %v419 = vunpack.c.h.b16 %v209
    %v420 = vunpack.c.l.b16 %v210
    %v421 = vunpack.c.l.b16 %v211
    %v422 = vunpack.c.h.b16 %v211
    %v423 = vunpack.c.l.b16 %v212
    %v424 = vunpack.c.l.b16 %v213
    %v425 = vunpack.c.h.b16 %v213
    %v426 = vunpack.c.l.b16 %v214
    %v427 = vunpack.c.l.b16 %v215
    %v428 = vunpack.c.h.b16 %v215
    %v429 = vunpack.c.l.b16 %v216
    %v430 = vunpack.c.l.b16 %v217
    %v431 = vunpack.c.h.b16 %v217
    %v432 = vunpack.c.l.b16 %v218
    %v433 = vunpack.c.l.b16 %v219
    %v434 = vunpack.c.h.b16 %v219
    %v435 = vunpack.c.l.b16 %v220
    %v436 = vunpack.c.l.b16 %v221
    %v437 = vunpack.c.h.b16 %v221
    %v438 = vunpack.c.l.b16 %v222
    %v439 = vunpack.c.l.b16 %v223
    %v440 = vunpack.c.h.b16 %v223
    %v441 = vunpack.c.l.b16 %v224
    %v442 = vunpack.c.l.b16 %v225
    %v443 = vunpack.c.h.b16 %v225
    %v444 = vunpack.c.l.b16 %v226
    %v445 = vunpack.c.l.b16 %v227
    %v446 = vunpack.c.h.b16 %v227
    %v447 = vunpack.c.l.b16 %v228
    %v448 = vunpack.c.l.b16 %v229
    %v449 = vunpack.c.h.b16 %v229
    %v450 = vunpack.c.l.b16 %v230
    %v451 = vunpack.c.l.b16 %v231
    %v452 = vunpack.c.h.b16 %v231
    %v453 = vunpack.c.l.b16 %v232
    %v454 = vunpack.c.l.b16 %v233
    %v455 = vunpack.c.h.b16 %v233
    %v456 = vunpack.c.l.b16 %v234
    %v457 = vunpack.c.l.b16 %v235
    %v458 = vunpack.c.h.b16 %v235
    %v459 = vunpack.c.l.b16 %v236
    %v460 = vunpack.c.l.b16 %v237
    %v461 = vunpack.c.h.b16 %v237
    %v462 = vunpack.c.l.b16 %v238
    %v463 = vunpack.c.l.b16 %v239
    %v464 = vunpack.c.h.b16 %v239
    %v465 = vunpack.c.l.b16 %v240
    %v466 = vunpack.c.l.b16 %v241
    %v467 = vunpack.c.h.b16 %v241
    %v468 = vunpack.c.l.b16 %v242
    %v469 = vunpack.c.l.b16 %v243
    %v470 = vunpack.c.h.b16 %v243
    %v471 = vunpack.c.l.b16 %v244
    %v472 = vunpack.c.l.b16 %v245
    %v473 = vunpack.c.h.b16 %v245
    %v474 = vunpack.c.l.b16 %v246
    %v475 = vunpack.c.l.b16 %v247
    %v476 = vunpack.c.h.b16 %v247
    %v477 = vunpack.c.l.b16 %v248
    %v478 = vunpack.c.l.b16 %v249
    %v479 = vunpack.c.h.b16 %v249
    %v480 = vunpack.c.l.b16 %v250
    %v481 = vunpack.c.l.b16 %v251
    %v482 = vunpack.c.h.b16 %v251
    %v483 = vunpack.c.l.b16 %v252
    %v484 = vunpack.c.l.b16 %v253
    %v485 = vunpack.c.h.b16 %v253
    %v486 = vunpack.c.l.b16 %v254
    %v487 = vunpack.c.l.b16 %v255
    %v488 = vunpack.c.h.b16 %v255
    %v489 = vunpack.c.l.b16 %v256
    %v490 = vunpack.c.l.b16 %v257
    %v491 = vunpack.c.h.b16 %v257
    %v492 = vunpack.c.l.b16 %v258
    %v493 = vunpack.c.l.b16 %v259
    %v494 = vunpack.c.h.b16 %v259
    %v495 = vunpack.c.l.b16 %v260
    %v496 = vunpack.c.l.b16 %v261
    %v497 = vunpack.c.h.b16 %v261
    %v498 = vunpack.c.l.b16 %v262
    %v499 = vunpack.c.l.b16 %v263
    %v500 = vunpack.c.h.b16 %v263
    %v501 = vunpack.c.l.b16 %v264
    %v502 = vunpack.c.l.b16 %v265
    %v503 = vunpack.c.h.b16 %v265
    %v504 = vunpack.c.l.b16 %v266
    %v505 = vunpack.c.l.b16 %v267
    %v506 = vunpack.c.h.b16 %v267
    %v507 = vunpack.c.l.b16 %v268
    %v508 = vunpack.c.l.b16 %v269
    %v509 = vunpack.c.h.b16 %v269
    %v510 = vunpack.c.l.b16 %v270
    %v511 = vunpack.c.l.b16 %v271
    %v512 = vunpack.c.h.b16 %v271
    %v513 = vunpack.c.l.b16 %v272
    %v514 = vunpack.c.l.b16 %v273
    %v515 = vunpack.c.h.b16 %v273
    %v516 = vunpack.c.l.b16 %v274
    %v517 = vunpack.c.l.b16 %v275
    %v518 = vunpack.c.h.b16 %v275
    %v519 = vunpack.c.l.b16 %v276
    %v520 = vunpack.c.l.b16 %v277
    %v521 = vunpack.c.h.b16 %v277
    %v522 = vunpack.c.l.b16 %v278
    %v523 = vunpack.c.l.b16 %v279
    %v524 = vunpack.c.h.b16 %v279
    %v525 = vunpack.c.l.b16 %v280
    %v526 = vunpack.c.l.b16 %v281
    %v527 = vunpack.c.h.b16 %v281
    %v528 = vunpack.c.l.b16 %v282
    %v529 = vunpack.c.l.b16 %v283
    %v530 = vunpack.c.h.b16 %v283
    %v531 = vunpack.c.l.b16 %v284
    %v532 = vunpack.c.l.b16 %v285
    %v533 = vunpack.c.h.b16 %v285
    %v534 = vunpack.c.l.b16 %v286
    %v535 = vpack.c.b16 %v394, %v391
    %v536 = vpack.c.b16 %v395, %v392
    %v537 = vpack.c.b16 %v396, %v393
    %v538 = vpack.c.b16 %v400, %v397
    %v539 = vpack.c.b16 %v401, %v398
    %v540 = vpack.c.b16 %v402, %v399
    %v541 = vpack.c.b16 %v406, %v403
    %v542 = vpack.c.b16 %v407, %v404
    %v543 = vpack.c.b16 %v408, %v405
    %v544 = vpack.c.b16 %v412, %v409
    %v545 = vpack.c.b16 %v413, %v410
    %v546 = vpack.c.b16 %v414, %v411
    %v547 = vpack.c.b16 %v418, %v415
    %v548 = vpack.c.b16 %v419, %v416
    %v549 = vpack.c.b16 %v420, %v417
    %v550 = vpack.c.b16 %v424, %v421
    %v551 = vpack.c.b16 %v425, %v422
    %v552 = vpack.c.b16 %v426, %v423
    %v553 = vpack.c.b16 %v430, %v427
    %v554 = vpack.c.b16 %v431, %v428
    %v555 = vpack.c.b16 %v432, %v429
    %v556 = vpack.c.b16 %v436, %v433
    %v557 = vpack.c.b16 %v437, %v434
    %v558 = vpack.c.b16 %v438, %v435
    %v559 = vpack.c.b16 %v442, %v439
    %v560 = vpack.c.b16 %v443, %v440
    %v561 = vpack.c.b16 %v444, %v441
    %v562 = vpack.c.b16 %v448, %v445
    %v563 = vpack.c.b16 %v449, %v446
    %v564 = vpack.c.b16 %v450, %v447
    %v565 = vpack.c.b16 %v454, %v451
    %v566 = vpack.c.b16 %v455, %v452
    %v567 = vpack.c.b16 %v456, %v453
    %v568 = vpack.c.b16 %v460, %v457
    %v569 = vpack.c.b16 %v461, %v458
    %v570 = vpack.c.b16 %v462, %v459
    %v571 = vpack.c.b16 %v466, %v463
    %v572 = vpack.c.b16 %v467, %v464
    %v573 = vpack.c.b16 %v468, %v465
    %v574 = vpack.c.b16 %v472, %v469
    %v575 = vpack.c.b16 %v473, %v470
    %v576 = vpack.c.b16 %v474, %v471
    %v577 = vpack.c.b16 %v478, %v475
    %v578 = vpack.c.b16 %v479, %v476
    %v579 = vpack.c.b16 %v480, %v477
    %v580 = vpack.c.b16 %v484, %v481
    %v581 = vpack.c.b16 %v485, %v482
    %v582 = vpack.c.b16 %v486, %v483
    %v583 = vpack.c.b16 %v490, %v487
    %v584 = vpack.c.b16 %v491, %v488
    %v585 = vpack.c.b16 %v492, %v489
    %v586 = vpack.c.b16 %v496, %v493
    %v587 = vpack.c.b16 %v497, %v494
    %v588 = vpack.c.b16 %v498, %v495
    %v589 = vpack.c.b16 %v502, %v499
    %v590 = vpack.c.b16 %v503, %v500
    %v591 = vpack.c.b16 %v504, %v501
    %v592 = vpack.c.b16 %v508, %v505
    %v593 = vpack.c.b16 %v509, %v506
    %v594 = vpack.c.b16 %v510, %v507
    %v595 = vpack.c.b16 %v514, %v511
    %v596 = vpack.c.b16 %v515, %v512
    %v597 = vpack.c.b16 %v516, %v513
    %v598 = vpack.c.b16 %v520, %v517
    %v599 = vpack.c.b16 %v521, %v518
    %v600 = vpack.c.b16 %v522, %v519
    %v601 = vpack.c.b16 %v526, %v523
    %v602 = vpack.c.b16 %v527, %v524
    %v603 = vpack.c.b16 %v528, %v525
    %v604 = vpack.c.b16 %v532, %v529
    %v605 = vpack.c.b16 %v533, %v530
    %v606 = vpack.c.b16 %v534, %v531
    %679 = vmatpush.bf16.msra.mxu0 %v556
    %680 = vmatpush.bf16.msra.mxu0 %v553
    %681 = vmatpush.bf16.msra.mxu0 %v550
    %682 = vmatpush.bf16.msra.mxu0 %v547
    %683 = vmatpush.bf16.msra.mxu0 %v544
    %684 = vmatpush.bf16.msra.mxu0 %v541
    %685 = vmatpush.bf16.msra.mxu0 %v538
    %686 = vmatpush.bf16.msra.mxu0 %v535
    %687 = vmatmul.bf16.gmra.mxu0 %v188
    %v688 = vpop.f32.mrf.mxu0
    %v689 = vadd.f32 %v289, %v688
    %v690 = vpop.f32.mrf.mxu0
    %691 = vdwg.mxu0
    %692 = vmatpush.bf16.msra.mxu0 %v580
    %693 = vmatpush.bf16.msra.mxu0 %v577
    %694 = vmatpush.bf16.msra.mxu0 %v574
    %695 = vmatpush.bf16.msra.mxu0 %v571
    %696 = vmatpush.bf16.msra.mxu0 %v568
    %697 = vmatpush.bf16.msra.mxu0 %v565
    %698 = vmatpush.bf16.msra.mxu0 %v562
    %699 = vmatpush.bf16.msra.mxu0 %v559
    %700 = vmatmul.bf16.gmra.mxu0 %v189
    %v701 = vpop.f32.mrf.mxu0
    %v702 = vadd.f32 %v689, %v701
    %v703 = vpop.f32.mrf.mxu0
    %704 = vdwg.mxu0
    %705 = vmatpush.bf16.msra.mxu0 %v604
    %706 = vmatpush.bf16.msra.mxu0 %v601
    %707 = vmatpush.bf16.msra.mxu0 %v598
    %708 = vmatpush.bf16.msra.mxu0 %v595
    %709 = vmatpush.bf16.msra.mxu0 %v592
    %710 = vmatpush.bf16.msra.mxu0 %v589
    %711 = vmatpush.bf16.msra.mxu0 %v586
    %712 = vmatpush.bf16.msra.mxu0 %v583
    %713 = vmatmul.bf16.gmra.mxu0 %v190
    %v714 = vpop.f32.mrf.mxu0
    %v715 = vadd.f32 %v702, %v714
    %v716 = vpop.f32.mrf.mxu0
    %717 = vdwg.mxu0
    %718 = vmatpush.bf16.msra.mxu0 %v557
    %719 = vmatpush.bf16.msra.mxu0 %v554
    %720 = vmatpush.bf16.msra.mxu0 %v551
    %721 = vmatpush.bf16.msra.mxu0 %v548
    %722 = vmatpush.bf16.msra.mxu0 %v545
    %723 = vmatpush.bf16.msra.mxu0 %v542
    %724 = vmatpush.bf16.msra.mxu0 %v539
    %725 = vmatpush.bf16.msra.mxu0 %v536
    %726 = vmatmul.bf16.gmra.mxu0 %v188
    %v727 = vpop.f32.mrf.mxu0
    %v728 = vadd.f32 %v290, %v727
    %v729 = vpop.f32.mrf.mxu0
    %730 = vdwg.mxu0
    %731 = vmatpush.bf16.msra.mxu0 %v581
    %732 = vmatpush.bf16.msra.mxu0 %v578
    %733 = vmatpush.bf16.msra.mxu0 %v575
    %734 = vmatpush.bf16.msra.mxu0 %v572
    %735 = vmatpush.bf16.msra.mxu0 %v569
    %736 = vmatpush.bf16.msra.mxu0 %v566
    %737 = vmatpush.bf16.msra.mxu0 %v563
    %738 = vmatpush.bf16.msra.mxu0 %v560
    %739 = vmatmul.bf16.gmra.mxu0 %v189
    %v740 = vpop.f32.mrf.mxu0
    %v741 = vadd.f32 %v728, %v740
    %v742 = vpop.f32.mrf.mxu0
    %743 = vdwg.mxu0
    %744 = vmatpush.bf16.msra.mxu0 %v605
    %745 = vmatpush.bf16.msra.mxu0 %v602
    %746 = vmatpush.bf16.msra.mxu0 %v599
    %747 = vmatpush.bf16.msra.mxu0 %v596
    %748 = vmatpush.bf16.msra.mxu0 %v593
    %749 = vmatpush.bf16.msra.mxu0 %v590
    %750 = vmatpush.bf16.msra.mxu0 %v587
    %751 = vmatpush.bf16.msra.mxu0 %v584
    %752 = vmatmul.bf16.gmra.mxu0 %v190
    %v753 = vpop.f32.mrf.mxu0
    %v754 = vadd.f32 %v741, %v753
    %v755 = vpop.f32.mrf.mxu0
    %756 = vdwg.mxu0
    %757 = vmatpush.bf16.msra.mxu0 %v558
    %758 = vmatpush.bf16.msra.mxu0 %v555
    %759 = vmatpush.bf16.msra.mxu0 %v552
    %760 = vmatpush.bf16.msra.mxu0 %v549
    %761 = vmatpush.bf16.msra.mxu0 %v546
    %762 = vmatpush.bf16.msra.mxu0 %v543
    %763 = vmatpush.bf16.msra.mxu0 %v540
    %764 = vmatpush.bf16.msra.mxu0 %v537
    %765 = vmatmul.bf16.gmra.mxu0 %v188
    %v766 = vpop.f32.mrf.mxu0
    %v767 = vadd.f32 %v291, %v766
    %v768 = vpop.f32.mrf.mxu0
    %769 = vdwg.mxu0
    %770 = vmatpush.bf16.msra.mxu0 %v582
    %771 = vmatpush.bf16.msra.mxu0 %v579
    %772 = vmatpush.bf16.msra.mxu0 %v576
    %773 = vmatpush.bf16.msra.mxu0 %v573
    %774 = vmatpush.bf16.msra.mxu0 %v570
    %775 = vmatpush.bf16.msra.mxu0 %v567
    %776 = vmatpush.bf16.msra.mxu0 %v564
    %777 = vmatpush.bf16.msra.mxu0 %v561
    %778 = vmatmul.bf16.gmra.mxu0 %v189
    %v779 = vpop.f32.mrf.mxu0
    %v780 = vadd.f32 %v767, %v779
    %v781 = vpop.f32.mrf.mxu0
    %782 = vdwg.mxu0
    %783 = vmatpush.bf16.msra.mxu0 %v606
    %784 = vmatpush.bf16.msra.mxu0 %v603
    %785 = vmatpush.bf16.msra.mxu0 %v600
    %786 = vmatpush.bf16.msra.mxu0 %v597
    %787 = vmatpush.bf16.msra.mxu0 %v594
    %788 = vmatpush.bf16.msra.mxu0 %v591
    %789 = vmatpush.bf16.msra.mxu0 %v588
    %790 = vmatpush.bf16.msra.mxu0 %v585
    %791 = vmatmul.bf16.gmra.mxu0 %v190
    %v792 = vpop.f32.mrf.mxu0
    %v793 = vadd.f32 %v780, %v792
    %v794 = vpop.f32.mrf.mxu0
    %795 = vdwg.mxu0
    %v796 = vmax.f32 %v715, 0.0
    %v797 = vmax.f32 %v754, 0.0
    %v798 = vmax.f32 %v793, 0.0
    %v799 = vpack.c.bf16 %v796, %v796
    %v800 = vpack.c.bf16 %v797, %v797
    %v801 = vpack.c.bf16 %v798, %v798
    %v802 = vld [vmem:[#allocation10] sm:$0xf]
    %v803 = vld [vmem:[#allocation10 + $0x4] sm:$0xf]
    %v804 = vld [vmem:[#allocation10 + $0x8] sm:$0xf]
    %v805 = vld [vmem:[#allocation10 + $0xc] sm:$0xf]
    %v806 = vld [vmem:[#allocation10 + $0x10] sm:$0xf]
    %v807 = vld [vmem:[#allocation10 + $0x14] sm:$0xf]
    %v808 = vld [vmem:[#allocation10 + $0x18] sm:$0xf]
    %v809 = vld [vmem:[#allocation10 + $0x1c] sm:$0xf]
    %v810 = vld [vmem:[#allocation10 + $0x20] sm:$0xf]
    %v811 = vld [vmem:[#allocation10 + $0x24] sm:$0xf]
    %v812 = vld [vmem:[#allocation10 + $0x28] sm:$0xf]
    %v813 = vld [vmem:[#allocation10 + $0x2c] sm:$0xf]
    %v814 = vld [vmem:[#allocation10 + $0x30] sm:$0xf]
    %v815 = vld [vmem:[#allocation10 + $0x34] sm:$0xf]
    %v816 = vld [vmem:[#allocation10 + $0x38] sm:$0xf]
    %v817 = vld [vmem:[#allocation10 + $0x3c] sm:$0xf]
    %v818 = vld [vmem:[#allocation10 + $0x40] sm:$0xf]
    %v819 = vld [vmem:[#allocation10 + $0x44] sm:$0xf]
    %v820 = vld [vmem:[#allocation10 + $0x48] sm:$0xf]
    %v821 = vld [vmem:[#allocation10 + $0x4c] sm:$0xf]
    %v822 = vld [vmem:[#allocation10 + $0x50] sm:$0xf]
    %v823 = vld [vmem:[#allocation10 + $0x54] sm:$0xf]
    %v824 = vld [vmem:[#allocation10 + $0x58] sm:$0xf]
    %v825 = vld [vmem:[#allocation10 + $0x5c] sm:$0xf]
    %v826 = vld [vmem:[#allocation10 + $0x60] sm:$0xf]
    %v827 = vld [vmem:[#allocation10 + $0x64] sm:$0xf]
    %v828 = vld [vmem:[#allocation10 + $0x68] sm:$0xf]
    %v829 = vld [vmem:[#allocation10 + $0x6c] sm:$0xf]
    %v830 = vld [vmem:[#allocation10 + $0x70] sm:$0xf]
    %v831 = vld [vmem:[#allocation10 + $0x74] sm:$0xf]
    %v832 = vld [vmem:[#allocation10 + $0x78] sm:$0xf]
    %v833 = vld [vmem:[#allocation10 + $0x7c] sm:$0xf]
    %v834 = vld [vmem:[#allocation10 + $0x80] sm:$0xf]
    %v835 = vld [vmem:[#allocation10 + $0x84] sm:$0xf]
    %v836 = vld [vmem:[#allocation10 + $0x88] sm:$0xf]
    %v837 = vld [vmem:[#allocation10 + $0x8c] sm:$0xf]
    %v838 = vld [vmem:[#allocation10 + $0x90] sm:$0xf]
    %v839 = vld [vmem:[#allocation10 + $0x94] sm:$0xf]
    %v840 = vld [vmem:[#allocation10 + $0x98] sm:$0xf]
    %v841 = vld [vmem:[#allocation10 + $0x9c] sm:$0xf]
    %v842 = vld [vmem:[#allocation10 + $0xa0] sm:$0xf]
    %v843 = vld [vmem:[#allocation10 + $0xa4] sm:$0xf]
    %v844 = vld [vmem:[#allocation10 + $0xa8] sm:$0xf]
    %v845 = vld [vmem:[#allocation10 + $0xac] sm:$0xf]
    %v846 = vld [vmem:[#allocation10 + $0xb0] sm:$0xf]
    %v847 = vld [vmem:[#allocation10 + $0xb4] sm:$0xf]
    %v848 = vld [vmem:[#allocation10 + $0xb8] sm:$0xf]
    %v849 = vld [vmem:[#allocation10 + $0xbc] sm:$0xf]
    %v850 = vld [vmem:[%s6] sm:$0x1]
    %v852 = vperm.slane %v850, 0
    %v902 = vunpack.c.l.b16 %v802
    %v903 = vunpack.c.l.b16 %v803
    %v904 = vunpack.c.l.b16 %v804
    %v905 = vunpack.c.l.b16 %v805
    %v906 = vunpack.c.l.b16 %v806
    %v907 = vunpack.c.l.b16 %v807
    %v908 = vunpack.c.l.b16 %v808
    %v909 = vunpack.c.l.b16 %v809
    %v910 = vunpack.c.l.b16 %v810
    %v911 = vunpack.c.l.b16 %v811
    %v912 = vunpack.c.l.b16 %v812
    %v913 = vunpack.c.l.b16 %v813
    %v914 = vunpack.c.l.b16 %v814
    %v915 = vunpack.c.l.b16 %v815
    %v916 = vunpack.c.l.b16 %v816
    %v917 = vunpack.c.l.b16 %v817
    %v918 = vunpack.c.l.b16 %v818
    %v919 = vunpack.c.l.b16 %v819
    %v920 = vunpack.c.l.b16 %v820
    %v921 = vunpack.c.l.b16 %v821
    %v922 = vunpack.c.l.b16 %v822
    %v923 = vunpack.c.l.b16 %v823
    %v924 = vunpack.c.l.b16 %v824
    %v925 = vunpack.c.l.b16 %v825
    %v926 = vunpack.c.l.b16 %v826
    %v927 = vunpack.c.l.b16 %v827
    %v928 = vunpack.c.l.b16 %v828
    %v929 = vunpack.c.l.b16 %v829
    %v930 = vunpack.c.l.b16 %v830
    %v931 = vunpack.c.l.b16 %v831
    %v932 = vunpack.c.l.b16 %v832
    %v933 = vunpack.c.l.b16 %v833
    %v934 = vunpack.c.l.b16 %v834
    %v935 = vunpack.c.l.b16 %v835
    %v936 = vunpack.c.l.b16 %v836
    %v937 = vunpack.c.l.b16 %v837
    %v938 = vunpack.c.l.b16 %v838
    %v939 = vunpack.c.l.b16 %v839
    %v940 = vunpack.c.l.b16 %v840
    %v941 = vunpack.c.l.b16 %v841
    %v942 = vunpack.c.l.b16 %v842
    %v943 = vunpack.c.l.b16 %v843
    %v944 = vunpack.c.l.b16 %v844
    %v945 = vunpack.c.l.b16 %v845
    %v946 = vunpack.c.l.b16 %v846
    %v947 = vunpack.c.l.b16 %v847
    %v948 = vunpack.c.l.b16 %v848
    %v949 = vunpack.c.l.b16 %v849
    %v950 = vpack.c.b16 %v903, %v902
    %v951 = vpack.c.b16 %v905, %v904
    %v952 = vpack.c.b16 %v907, %v906
    %v953 = vpack.c.b16 %v909, %v908
    %v954 = vpack.c.b16 %v911, %v910
    %v955 = vpack.c.b16 %v913, %v912
    %v956 = vpack.c.b16 %v915, %v914
    %v957 = vpack.c.b16 %v917, %v916
    %v958 = vpack.c.b16 %v919, %v918
    %v959 = vpack.c.b16 %v921, %v920
    %v960 = vpack.c.b16 %v923, %v922
    %v961 = vpack.c.b16 %v925, %v924
    %v962 = vpack.c.b16 %v927, %v926
    %v963 = vpack.c.b16 %v929, %v928
    %v964 = vpack.c.b16 %v931, %v930
    %v965 = vpack.c.b16 %v933, %v932
    %v966 = vpack.c.b16 %v935, %v934
    %v967 = vpack.c.b16 %v937, %v936
    %v968 = vpack.c.b16 %v939, %v938
    %v969 = vpack.c.b16 %v941, %v940
    %v970 = vpack.c.b16 %v943, %v942
    %v971 = vpack.c.b16 %v945, %v944
    %v972 = vpack.c.b16 %v947, %v946
    %v973 = vpack.c.b16 %v949, %v948
    %998 = vmatpush.bf16.msra.mxu0 %v957
    %999 = vmatpush.bf16.msra.mxu0 %v956
    %1000 = vmatpush.bf16.msra.mxu0 %v955
    %1001 = vmatpush.bf16.msra.mxu0 %v954
    %1002 = vmatpush.bf16.msra.mxu0 %v953
    %1003 = vmatpush.bf16.msra.mxu0 %v952
    %1004 = vmatpush.bf16.msra.mxu0 %v951
    %1005 = vmatpush.bf16.msra.mxu0 %v950
    %1006 = vmatmul.bf16.gmra.mxu0 %v799
    %v1007 = vpop.f32.mrf.mxu0
    %v1008 = vadd.f32 %v852, %v1007
    %v1009 = vpop.f32.mrf.mxu0
    %1010 = vdwg.mxu0
    %1011 = vmatpush.bf16.msra.mxu0 %v965
    %1012 = vmatpush.bf16.msra.mxu0 %v964
    %1013 = vmatpush.bf16.msra.mxu0 %v963
    %1014 = vmatpush.bf16.msra.mxu0 %v962
    %1015 = vmatpush.bf16.msra.mxu0 %v961
    %1016 = vmatpush.bf16.msra.mxu0 %v960
    %1017 = vmatpush.bf16.msra.mxu0 %v959
    %1018 = vmatpush.bf16.msra.mxu0 %v958
    %1019 = vmatmul.bf16.gmra.mxu0 %v800
    %v1020 = vpop.f32.mrf.mxu0
    %v1021 = vadd.f32 %v1008, %v1020
    %v1022 = vpop.f32.mrf.mxu0
    %1023 = vdwg.mxu0
    %1024 = vmatpush.bf16.msra.mxu0 %v973
    %1025 = vmatpush.bf16.msra.mxu0 %v972
    %1026 = vmatpush.bf16.msra.mxu0 %v971
    %1027 = vmatpush.bf16.msra.mxu0 %v970
    %1028 = vmatpush.bf16.msra.mxu0 %v969
    %1029 = vmatpush.bf16.msra.mxu0 %v968
    %1030 = vmatpush.bf16.msra.mxu0 %v967
    %1031 = vmatpush.bf16.msra.mxu0 %v966
    %1032 = vmatmul.bf16.gmra.mxu0 %v801
    %v1033 = vpop.f32.mrf.mxu0
    %v1034 = vadd.f32 %v1021, %v1033
    %v1035 = vpop.f32.mrf.mxu0
    %1036 = vdwg.mxu0
    %1037 = vst [vmem:[#allocation11] sm:$0xff] %v1034
    // Predicated region
    $region50: #{tpu_custom_call.1} parent=1 // pred_check
      _
    $region51: #{tpu_custom_call.1} parent=1 // pred_check_branch
      %1039 = sbr.rel (0) target = $region53
    $region52: #{tpu_custom_call.1} parent=1 // pred_region
      %1041 = vsyncadd [#allocation4], 0
      %s1043 = sshll.u32 [#allocation11], 4
      %s1044 = int_to_ptr.vmem [resolvable:$true] %s1043
      %s1045 = sshll.u32 %s7, 4
      %s1046 = int_to_ptr.hbm [resolvable:$true] %s1045
      %1048 = dma.vmem_to_hbm [thread:$0]  %s1044, 128, %s1046, [#allocation4]
    $region53: #{tpu_custom_call.1} parent=1 // pred_fallthru
      _
    // Predicated region
    $region54: #{tpu_custom_call.1} parent=1 // pred_check
      _
    $region55: #{tpu_custom_call.1} parent=1 // pred_check_branch
      %1050 = sbr.rel (0) target = $region57
    $region56: #{tpu_custom_call.1} parent=1 // pred_region
      %1052 = dma.done [#allocation4], 128
    $region57: #{tpu_custom_call.1} parent=1 // pred_fallthru
      _
    %1053 = vsyncpa [#allocation3], 1
    %1054 = vsyncpa [#allocation6], 1
    %1055 = vsyncpa [#allocation9], 1
    %1056 = vsyncpa [#allocation4], 1

</llo_original>
